<compile_context>
chip_gen: v6e
topology: v6e:2x2x1
jax: 0.10.0
libtpu: 0.0.40
codegen_flags: <defaults>
</compile_context>

<pallas_src>
import math

import jax
import jax.numpy as jnp
from jax import lax
from jax.experimental import pallas as pl
from jax.experimental.pallas import tpu as pltpu


def _round_up(v, m):
    return ((v + m - 1) // m) * m


# ----------------------------------------------------------------------------
# Generation-aware VMEM planning.
# ----------------------------------------------------------------------------
def _tpu_generation():
    try:
        kind = jax.devices()[0].device_kind.lower()
    except Exception:
        return "unknown"
    if "v7" in kind:
        return "v7x"
    if "v6" in kind:
        return "v6e"
    if "v5" in kind and ("lite" in kind or "v5e" in kind):
        return "v5e"
    return "unknown"


def _vmem_plan():
    """Returns (double-buffered block budget, vmem_limit_bytes, megacore_cap)."""
    mib = 1024 * 1024
    gen = _tpu_generation()
    if gen == "v6e":   # 128 MiB VMEM, 1 TensorCore
        return 96 * mib, 110 * mib, False
    if gen == "v5e":   # 128 MiB VMEM, 1 TensorCore, 16 MiB default scoped limit
        return 80 * mib, 100 * mib, False
    if gen == "v7x":   # 64 MiB VMEM, 2 TensorCores -> keep >=2 parallel steps
        return 44 * mib, 56 * mib, True
    # Unknown generation: conservative (v7x-safe) plan.
    return 40 * mib, 50 * mib, True


def _pick_block_b(B, per_batch_db_bytes, budget_db_bytes, apply_megacore_cap):
    """Largest batch fold whose double-buffered footprint fits the budget,
    divides B, and (on v7x only) keeps >= 2 parallel grid steps."""
    bb = max(1, min(B, budget_db_bytes // max(per_batch_db_bytes, 1)))
    if apply_megacore_cap and B >= 2:
        bb = min(bb, max(1, (B + 1) // 2))
    while B % bb:
        bb -= 1
    return bb


# ----------------------------------------------------------------------------
# Kernels.
# ----------------------------------------------------------------------------
def _gcn_batched_kernel(x_ref, adj_ref, w_ref, o_ref):
    # x_ref  : (Bt, N_k, F_p) bf16   (N_k = round_up(N,128), contraction dim)
    # adj_ref: (Bt, N_m, N_k) bf16   (N_m = round_up(N,16),  output rows)
    # w_ref  : (Bt, F_p, F_p) bf16
    # o_ref  : (Bt, N_m, F_p) bf16
    bt = x_ref.shape[0]

    def body(i, carry):
        support = jnp.dot(
            x_ref[i], w_ref[i], preferred_element_type=jnp.float32
        ).astype(jnp.bfloat16)  # keep bf16 for the second MXU matmul
        o_ref[i] = jnp.dot(
            adj_ref[i], support, preferred_element_type=jnp.float32
        ).astype(o_ref.dtype)
        return carry

    # fori_loop bounds the per-iteration live set for large batch folds;
    # fully unrolled when the fold is small.
    lax.fori_loop(0, bt, body, None, unroll=bt <= 8)


def _gcn_tiled_kernel(x_ref, adj_ref, w_ref, o_ref, support_ref, acc_ref):
    # Grid: (B, n_m, n_k), k (reduction over adj columns) innermost/'arbitrary'.
    # x_ref      : (1, tk, F_p)   bf16, block (b, k, 0)
    # adj_ref    : (1, tm, tk)    bf16, block (b, m, k)
    # w_ref      : (1, F_p, F_p)  bf16, block (b, 0, 0)  (resident per batch)
    # o_ref      : (1, tm, F_p)   bf16, block (b, m, 0)  (revisited across k)
    # support_ref: VMEM (N_k, F_p) bf16 scratch (persists across grid steps)
    # acc_ref    : VMEM (tm, F_p)  f32 accumulator
    m = pl.program_id(1)
    k = pl.program_id(2)
    tk = x_ref.shape[1]
    off = pl.multiple_of(k * tk, tk)

    # Compute support = x @ W exactly once per batch: slab-by-slab while the
    # first row of adj tiles (m == 0) streams through.  adj is then read from
    # HBM exactly once per batch (the bandwidth floor for this kernel).
    @pl.when(m == 0)
    def _():
        slab = jnp.dot(x_ref[0], w_ref[0], preferred_element_type=jnp.float32)
        support_ref[pl.ds(off, tk), :] = slab.astype(support_ref.dtype)

    @pl.when(k == 0)
    def _():
        acc_ref[...] = jnp.zeros_like(acc_ref)

    acc_ref[...] += jnp.dot(
        adj_ref[0],
        support_ref[pl.ds(off, tk), :],
        preferred_element_type=jnp.float32,
    )

    @pl.when(k == pl.num_programs(2) - 1)
    def _():
        o_ref[0] = acc_ref[...].astype(o_ref.dtype)


# ----------------------------------------------------------------------------
# Wrapper.
# ----------------------------------------------------------------------------
def graph_convolution(x, adj, weight, *, force_tiled=False, tm=256, tk=256):
    """out[b] = adj[b] @ (x[b] @ weight[b]) for every batch b.

    Bias is intentionally NOT applied: the reference PyTorch forward computes
    `output + self.bias` and throws the result away.

    Numerics: bf16 operands, f32 MXU accumulation, bf16 intermediate `support`
    and bf16 output writeback (re-cast to the input dtype by the wrapper).
    """
    B, N, F = x.shape
    assert adj.shape == (B, N, N)
    assert weight.shape == (B, F, F)

    budget_db, vmem_limit, megacore_cap = _vmem_plan()
    out_dtype = jnp.bfloat16       # halves HBM writeback (one extra rounding)
    out_itemsize = 2

    F_pad = _round_up(F, 128)

    # Asymmetric padding for the simple plan: only the contraction copy of N
    # needs 128 (adj's last dim / x's rows); adj rows and output rows only need
    # the bf16 sublane multiple.  Zero padding is numerically exact (padded
    # rows/cols contribute zeros that are sliced off at the end).
    N_k = _round_up(N, 128)
    N_m = _round_up(N, 16)

    per_batch = (N_k * F_pad + N_m * N_k + F_pad * F_pad) * 2  # bf16 inputs
    per_batch += N_m * F_pad * out_itemsize                    # output block
    per_batch_db = 2 * per_batch                               # double buffers

    use_tiled = force_tiled or per_batch_db > budget_db

    w_p = jnp.pad(weight, ((0, 0), (0, F_pad - F), (0, F_pad - F))).astype(
        jnp.bfloat16
    )

    if not use_tiled:
        # ------------------------- simple (full-N) plan ---------------------
        x_p = jnp.pad(x, ((0, 0), (0, N_k - N), (0, F_pad - F))).astype(
            jnp.bfloat16
        )
        adj_p = jnp.pad(adj, ((0, 0), (0, N_m - N), (0, N_k - N))).astype(
            jnp.bfloat16
        )

        block_b = _pick_block_b(B, per_batch_db, budget_db, megacore_cap)
        grid_b = B // block_b

        flops = 2 * B * (N_k * F_pad * F_pad + N_m * N_k * F_pad)
        bytes_accessed = (
            (x_p.size + adj_p.size + w_p.size) * 2 + B * N_m * F_pad * out_itemsize
        )

        out_p = pl.pallas_call(
            _gcn_batched_kernel,
            out_shape=jax.ShapeDtypeStruct((B, N_m, F_pad), out_dtype),
            grid_spec=pltpu.PrefetchScalarGridSpec(
                num_scalar_prefetch=0,
                grid=(grid_b,),
                in_specs=[
                    pl.BlockSpec((block_b, N_k, F_pad), lambda b: (b, 0, 0)),
                    pl.BlockSpec((block_b, N_m, N_k), lambda b: (b, 0, 0)),
                    pl.BlockSpec((block_b, F_pad, F_pad), lambda b: (b, 0, 0)),
                ],
                out_specs=pl.BlockSpec((block_b, N_m, F_pad), lambda b: (b, 0, 0)),
            ),
            compiler_params=pltpu.CompilerParams(
                dimension_semantics=("parallel",),
                vmem_limit_bytes=vmem_limit,
            ),
            cost_estimate=pl.CostEstimate(
                flops=flops, transcendentals=0, bytes_accessed=bytes_accessed
            ),
        )(x_p, adj_p, w_p)
    else:
        # ------------------------- tiled (large-N) plan ---------------------
        # tm/tk = 256 fills the 2x256x256 MXU on v6e/v7x (128 is enough on v5e
        # but 256 is also fine there).
        N_kt = _round_up(N, tk)
        N_mt = _round_up(N, tm)
        n_k = N_kt // tk
        n_m = N_mt // tm

        x_p = jnp.pad(x, ((0, 0), (0, N_kt - N), (0, F_pad - F))).astype(
            jnp.bfloat16
        )
        adj_p = jnp.pad(adj, ((0, 0), (0, N_mt - N), (0, N_kt - N))).astype(
            jnp.bfloat16
        )

        flops = 2 * B * (N_kt * F_pad * F_pad + N_mt * N_kt * F_pad)
        bytes_accessed = (
            (x_p.size + adj_p.size + w_p.size) * 2
            + B * N_mt * F_pad * out_itemsize
        )

        out_p = pl.pallas_call(
            _gcn_tiled_kernel,
            out_shape=jax.ShapeDtypeStruct((B, N_mt, F_pad), out_dtype),
            grid_spec=pltpu.PrefetchScalarGridSpec(
                num_scalar_prefetch=0,
                grid=(B, n_m, n_k),
                in_specs=[
                    pl.BlockSpec((1, tk, F_pad), lambda b, m, k: (b, k, 0)),
                    pl.BlockSpec((1, tm, tk), lambda b, m, k: (b, m, k)),
                    pl.BlockSpec((1, F_pad, F_pad), lambda b, m, k: (b, 0, 0)),
                ],
                out_specs=pl.BlockSpec((1, tm, F_pad), lambda b, m, k: (b, m, 0)),
                scratch_shapes=[
                    pltpu.VMEM((N_kt, F_pad), jnp.bfloat16),  # cached support
                    pltpu.VMEM((tm, F_pad), jnp.float32),     # accumulator
                ],
            ),
            compiler_params=pltpu.CompilerParams(
                # m must NOT be 'parallel': the support cache is filled while
                # sweeping m == 0 and reused for m > 0 on the same core.
                dimension_semantics=("parallel", "arbitrary", "arbitrary"),
                vmem_limit_bytes=vmem_limit,
            ),
            cost_estimate=pl.CostEstimate(
                flops=flops, transcendentals=0, bytes_accessed=bytes_accessed
            ),
        )(x_p, adj_p, w_p)

    # Strip padding; return in the input dtype.
    return out_p[:, :N, :F].astype(x.dtype)


# ----------------------------------------------------------------------------
# Demo / self-check.
# ----------------------------------------------------------------------------
def _reference(x, adj, weight):
    # Mirrors the kernel's numerics: bf16 operands, f32 accumulation, bf16
    # `support` between the matmuls, bf16 output writeback.
    xb = x.astype(jnp.bfloat16).astype(jnp.float32)
    ab = adj.astype(jnp.bfloat16).astype(jnp.float32)
    wb = weight.astype(jnp.bfloat16).astype(jnp.float32)
    sup = jnp.einsum("bnk,bkf->bnf", xb, wb)
    sup = sup.astype(jnp.bfloat16).astype(jnp.float32)
    out = jnp.einsum("bnm,bmf->bnf", ab, sup)
    return out.astype(jnp.bfloat16).astype(jnp.float32)


if __name__ == "__main__":
    # Small shapes consistent with the module: in_features == out_features
    # (forced by the PyTorch module assigning into zeros_like(input)).
    B, N, F = 2, 16, 32

    key = jax.random.PRNGKey(0)
    kx, kadj, kw = jax.random.split(key, 3)

    x = jax.random.normal(kx, (B, N, F), dtype=jnp.float32)
    adj = jax.random.normal(kadj, (B, N, N), dtype=jnp.float32)
    # reset_parameters(): uniform(-stdv, stdv), stdv = 1/sqrt(in_features).
    stdv = 1.0 / math.sqrt(F)
    weight = jax.random.uniform(
        kw, (B, F, F), dtype=jnp.float32, minval=-stdv, maxval=stdv
    )
    # Bias exists as a parameter, but the PyTorch forward discards
    # `output + self.bias`, so it is intentionally not applied.

    out = jax.block_until_ready(graph_convolution(x, adj, weight))
    ref = _reference(x, adj, weight)
    assert out.shape == (B, N, F)
    assert jnp.allclose(out, ref, atol=2e-2, rtol=2e-2), float(
        jnp.max(jnp.abs(out - ref))
    )

    # Also exercise the tiled large-N path (forced) at a still-small shape
    # that is not a multiple of the tile sizes.
    N2, F2 = 300, 72
    kx2, kadj2, kw2 = jax.random.split(jax.random.PRNGKey(1), 3)
    x2 = jax.random.normal(kx2, (B, N2, F2), dtype=jnp.float32)
    adj2 = jax.random.normal(kadj2, (B, N2, N2), dtype=jnp.float32)
    stdv2 = 1.0 / math.sqrt(F2)
    w2 = jax.random.uniform(
        kw2, (B, F2, F2), dtype=jnp.float32, minval=-stdv2, maxval=stdv2
    )
    out2 = jax.block_until_ready(
        graph_convolution(x2, adj2, w2, force_tiled=True)
    )
    ref2 = _reference(x2, adj2, w2)
    assert out2.shape == (B, N2, F2)
    assert jnp.allclose(out2, ref2, atol=2e-2, rtol=2e-2), float(
        jnp.max(jnp.abs(out2 - ref2))
    )

    print("KERNEL_OK")
</pallas_src>

<mosaic_0001>
module attributes {stable_mosaic.version = 11 : i64} {
  func.func @_gcn_batched_kernel(%arg0: i32, %arg1: memref<1x128x128xbf16, #tpu.memory_space<vmem>>, %arg2: memref<1x16x128xbf16, #tpu.memory_space<vmem>>, %arg3: memref<1x128x128xbf16, #tpu.memory_space<vmem>>, %arg4: memref<1x16x128xbf16, #tpu.memory_space<vmem>>) attributes {dimension_semantics = [#tpu.dimension_semantics<parallel>], iteration_bounds = array<i64: 2>, scalar_prefetch = 0 : i64, scratch_operands = 0 : i64, tpu.core_type = #tpu.core_type<tc>, window_params = [{transform_indices = @transform_0, window_bounds = array<i64: 1, 128, 128>}, {transform_indices = @transform_1, window_bounds = array<i64: 1, 16, 128>}, {transform_indices = @transform_2, window_bounds = array<i64: 1, 128, 128>}, {transform_indices = @transform_3, window_bounds = array<i64: 1, 16, 128>}]} {
    %c0_i32 = arith.constant 0 : i32
    %0 = arith.index_cast %c0_i32 : i32 to index
    %c0 = arith.constant 0 : index
    %c0_0 = arith.constant 0 : index
    %1 = vector.load %arg1[%0, %c0, %c0_0] : memref<1x128x128xbf16, #tpu.memory_space<vmem>>, vector<1x128x128xbf16>
    %2 = vector.shape_cast %1 : vector<1x128x128xbf16> to vector<128x128xbf16>
    %3 = arith.index_cast %c0_i32 : i32 to index
    %c0_1 = arith.constant 0 : index
    %c0_2 = arith.constant 0 : index
    %4 = vector.load %arg3[%3, %c0_1, %c0_2] : memref<1x128x128xbf16, #tpu.memory_space<vmem>>, vector<1x128x128xbf16>
    %5 = vector.shape_cast %4 : vector<1x128x128xbf16> to vector<128x128xbf16>
    %cst = arith.constant dense<0.000000e+00> : vector<128x128xf32>
    %6 = tpu.matmul %2, %5, %cst {dimension_numbers = #tpu.dot_dimension_numbers<[1], [0], [0], [1], [0, 0, 1, 1], [], []>} : vector<128x128xbf16>, vector<128x128xbf16>, vector<128x128xf32> -> vector<128x128xf32>
    %7 = arith.truncf %6 : vector<128x128xf32> to vector<128x128xbf16>
    %8 = arith.index_cast %c0_i32 : i32 to index
    %c0_3 = arith.constant 0 : index
    %c0_4 = arith.constant 0 : index
    %9 = vector.load %arg2[%8, %c0_3, %c0_4] : memref<1x16x128xbf16, #tpu.memory_space<vmem>>, vector<1x16x128xbf16>
    %10 = vector.shape_cast %9 : vector<1x16x128xbf16> to vector<16x128xbf16>
    %cst_5 = arith.constant dense<0.000000e+00> : vector<16x128xf32>
    %11 = tpu.matmul %10, %7, %cst_5 {dimension_numbers = #tpu.dot_dimension_numbers<[1], [0], [0], [1], [0, 0, 1, 1], [], []>} : vector<16x128xbf16>, vector<128x128xbf16>, vector<16x128xf32> -> vector<16x128xf32>
    %12 = arith.truncf %11 : vector<16x128xf32> to vector<16x128xbf16>
    %13 = arith.index_cast %c0_i32 : i32 to index
    %c0_6 = arith.constant 0 : index
    %c0_7 = arith.constant 0 : index
    %14 = vector.load %arg4[%13, %c0_6, %c0_7] : memref<1x16x128xbf16, #tpu.memory_space<vmem>>, vector<1x16x128xbf16>
    %15 = vector.shape_cast %14 : vector<1x16x128xbf16> to vector<16x128xbf16>
    %16 = vector.shape_cast %12 : vector<16x128xbf16> to vector<1x16x128xbf16>
    tpu.vector_store %arg4[%13, %c0_6, %c0_7], %16 {strides = array<i32>} : memref<1x16x128xbf16, #tpu.memory_space<vmem>>, vector<1x16x128xbf16>,
    %c1_i32 = arith.constant 1 : i32
    return
  }
  func.func @transform_0(%arg0: i32) -> (i32, i32, i32) {
    %c0_i32 = arith.constant 0 : i32
    %c0_i32_0 = arith.constant 0 : i32
    %c0_i32_1 = arith.constant 0 : i32
    return %arg0, %c0_i32, %c0_i32_0 : i32, i32, i32
  }
  func.func @transform_1(%arg0: i32) -> (i32, i32, i32) {
    %c0_i32 = arith.constant 0 : i32
    %c0_i32_0 = arith.constant 0 : i32
    %c0_i32_1 = arith.constant 0 : i32
    return %arg0, %c0_i32, %c0_i32_0 : i32, i32, i32
  }
  func.func @transform_2(%arg0: i32) -> (i32, i32, i32) {
    %c0_i32 = arith.constant 0 : i32
    %c0_i32_0 = arith.constant 0 : i32
    %c0_i32_1 = arith.constant 0 : i32
    return %arg0, %c0_i32, %c0_i32_0 : i32, i32, i32
  }
  func.func @transform_3(%arg0: i32) -> (i32, i32, i32) {
    %c0_i32 = arith.constant 0 : i32
    %c0_i32_0 = arith.constant 0 : i32
    %c0_i32_1 = arith.constant 0 : i32
    return %arg0, %c0_i32, %c0_i32_0 : i32, i32, i32
  }
}

</mosaic_0001>

<llo_original>
// kernel: tpu_custom_call.1
$region0: #{tpu_custom_call.1}
  #allocation0 [shape = 'u32[]', space=smem, size = 0x4, offset = 0x4, fixed_abs, tag = 'smem constant byte address 0x4 - core index']
  #allocation1 [shape = 'u32[144,128]{1,0:T(1,128)}', space=vmem, size = 0x12000, scoped, tag = 'internal scratch']
  %s0 = inlined_call_operand.hbm [shape: bf16[2,128,128], index: 0, kind: input, shape index: {}]
  %s1 = inlined_call_operand.hbm [shape: bf16[2,16,128], index: 1, kind: input, shape index: {}]
  %s2 = inlined_call_operand.hbm [shape: bf16[2,128,128], index: 2, kind: input, shape index: {}]
  %s3 = inlined_call_operand.hbm [shape: bf16[2,16,128], index: 3, kind: output, shape index: {}]
  %s4 = sld [smem:[#allocation0]]
  $region57: #{tpu_custom_call.1} parent=0
    _
  %s6 = ssub.s32 1, %s4
  %s7 = scalar_select 0, %s6, %s4
  $region1: #{tpu_custom_call.1} parent=0
    #allocation2 [shape = 'u8[65536]{0}', space=vmem, size = 0x10000, scoped, tag = 'input window, operand 0']
    #allocation3 [shape = 's32[2]{0}', space=sflag, size = 0x8, scoped, tag = 'scoped memory for tpu_custom_call.1']
    #allocation4 [shape = 's32[2]{0}', space=sflag, size = 0x8, scoped, tag = 'scoped memory for tpu_custom_call.1']
    #allocation5 [shape = 'u8[8192]{0}', space=vmem, size = 0x2000, scoped, tag = 'input window, operand 1']
    #allocation6 [shape = 's32[2]{0}', space=sflag, size = 0x8, scoped, tag = 'scoped memory for tpu_custom_call.1']
    #allocation7 [shape = 'u8[65536]{0}', space=vmem, size = 0x10000, scoped, tag = 'input window, operand 2']
    #allocation8 [shape = 'u8[8192]{0}', space=vmem, size = 0x2000, scoped, tag = 'output window, operand 0']
    %8 = vsyncpa [#allocation3], 0
    %s9 = scalar_lea.sflag [#allocation3], 1
    %10 = vsyncpa %s9, 0
    %11 = vsyncpa [#allocation6], 0
    %s12 = scalar_lea.sflag [#allocation6], 1
    %13 = vsyncpa %s12, 0
    %14 = vsyncpa [#allocation4], 0
    %s15 = scalar_lea.sflag [#allocation4], 1
    %16 = vsyncpa %s15, 0
    loop: start=0, step=1, limit=4
    $region2: #{tpu_custom_call.1} parent=1 // loop_pre_header
      _
    $region3: #{tpu_custom_call.1} parent=1 // loop_header
      %s18 = sphi 0, %s22
      %p19 = scmp.ge.s32.totalorder %s18, 4
      %s28 = sphi 0, %s30
      %s31 = sphi 0, %s28
      %s32 = sphi 0, %s31
      %s48 = sphi 0, %s32
      %s54 = sphi 0, %s56
      %s57 = sphi 0, %s54
      %s58 = sphi 0, %s57
      %s74 = sphi 0, %s58
      %s80 = sphi 0, %s82
      %s83 = sphi 0, %s80
      %s84 = sphi 0, %s83
      %s100 = sphi 0, %s84
      %s106 = sphi 0, %s108
      %s109 = sphi 0, %s106
      %s110 = sphi 0, %s109
      %s126 = sphi 0, %s110
    $region4: #{tpu_custom_call.1} parent=1 // loop_header_branch
      %21 = sbr.rel (%p19) target = $region8
    $region5: #{tpu_custom_call.1} parent=1 // loop_body
      %s23 = ssub.s32 %s18, 1
      %s24 = ssub.s32 %s18, 2
      %s25 = sadd.s32 %s18, 1
      %s26 = ssub.s32 %s18, %s25
      %p27 = scmp.eq.s32.totalorder %s26, 0
      %s29 = sadd.s32 %s28, 1
      %s30 = scalar_select %p27, %s28, %s29
      %p33 = pneg %p27
      %p34 = scmp.eq.s32.totalorder %s18, 1
      %p35 = por %p33, %p34
      %p36 = scmp.ne.s32.totalorder %s28, %s31
      %p37 = scmp.eq.s32.totalorder %s18, 0
      %p38 = por %p36, %p37
      %p39 = scmp.ne.s32.totalorder %s28, %s31
      %p40 = scmp.eq.s32.totalorder %s23, 1
      %p41 = por %p39, %p40
      %p42 = scmp.ne.s32.totalorder %s31, %s32
      %p43 = scmp.eq.s32.totalorder %s23, 0
      %p44 = por %p42, %p43
      %p45 = scmp.ne.s32.totalorder %s31, %s32
      %p46 = scmp.eq.s32.totalorder %s24, 1
      %p47 = por %p45, %p46
      %p49 = scmp.ne.s32.totalorder %s32, %s48
      %p50 = scmp.eq.s32.totalorder %s24, 0
      %p51 = por %p49, %p50
      %s52 = ssub.s32 %s18, %s25
      %p53 = scmp.eq.s32.totalorder %s52, 0
      %s55 = sadd.s32 %s54, 1
      %s56 = scalar_select %p53, %s54, %s55
      %p59 = pneg %p53
      %p60 = scmp.eq.s32.totalorder %s18, 1
      %p61 = por %p59, %p60
      %p62 = scmp.ne.s32.totalorder %s54, %s57
      %p63 = scmp.eq.s32.totalorder %s18, 0
      %p64 = por %p62, %p63
      %p65 = scmp.ne.s32.totalorder %s54, %s57
      %p66 = scmp.eq.s32.totalorder %s23, 1
      %p67 = por %p65, %p66
      %p68 = scmp.ne.s32.totalorder %s57, %s58
      %p69 = scmp.eq.s32.totalorder %s23, 0
      %p70 = por %p68, %p69
      %p71 = scmp.ne.s32.totalorder %s57, %s58
      %p72 = scmp.eq.s32.totalorder %s24, 1
      %p73 = por %p71, %p72
      %p75 = scmp.ne.s32.totalorder %s58, %s74
      %p76 = scmp.eq.s32.totalorder %s24, 0
      %p77 = por %p75, %p76
      %s78 = ssub.s32 %s18, %s25
      %p79 = scmp.eq.s32.totalorder %s78, 0
      %s81 = sadd.s32 %s80, 1
      %s82 = scalar_select %p79, %s80, %s81
      %p85 = pneg %p79
      %p86 = scmp.eq.s32.totalorder %s18, 1
      %p87 = por %p85, %p86
      %p88 = scmp.ne.s32.totalorder %s80, %s83
      %p89 = scmp.eq.s32.totalorder %s18, 0
      %p90 = por %p88, %p89
      %p91 = scmp.ne.s32.totalorder %s80, %s83
      %p92 = scmp.eq.s32.totalorder %s23, 1
      %p93 = por %p91, %p92
      %p94 = scmp.ne.s32.totalorder %s83, %s84
      %p95 = scmp.eq.s32.totalorder %s23, 0
      %p96 = por %p94, %p95
      %p97 = scmp.ne.s32.totalorder %s83, %s84
      %p98 = scmp.eq.s32.totalorder %s24, 1
      %p99 = por %p97, %p98
      %p101 = scmp.ne.s32.totalorder %s84, %s100
      %p102 = scmp.eq.s32.totalorder %s24, 0
      %p103 = por %p101, %p102
      %s104 = ssub.s32 %s18, %s25
      %p105 = scmp.eq.s32.totalorder %s104, 0
      %s107 = sadd.s32 %s106, 1
      %s108 = scalar_select %p105, %s106, %s107
      %p111 = pneg %p105
      %p112 = scmp.eq.s32.totalorder %s18, 1
      %p113 = por %p111, %p112
      %p114 = scmp.ne.s32.totalorder %s106, %s109
      %p115 = scmp.eq.s32.totalorder %s18, 0
      %p116 = por %p114, %p115
      %p117 = scmp.ne.s32.totalorder %s106, %s109
      %p118 = scmp.eq.s32.totalorder %s23, 1
      %p119 = por %p117, %p118
      %p120 = scmp.ne.s32.totalorder %s109, %s110
      %p121 = scmp.eq.s32.totalorder %s23, 0
      %p122 = por %p120, %p121
      %p123 = scmp.ne.s32.totalorder %s109, %s110
      %p124 = scmp.eq.s32.totalorder %s24, 1
      %p125 = por %p123, %p124
      %p127 = scmp.ne.s32.totalorder %s110, %s126
      %p128 = scmp.eq.s32.totalorder %s24, 0
      %p129 = por %p127, %p128
      %p130 = scmp.le.s32.totalorder 1, %s18
      %p131 = scmp.lt.s32.totalorder %s18, 3
      %p132 = pnand %p130, %p131
      %p133 = pneg %p132
      // Predicated region
      $region9: #{tpu_custom_call.1} parent=5 // pred_check
        _
      $region10: #{tpu_custom_call.1} parent=5 // pred_check_branch
        %135 = sbr.rel (%p132) target = $region12
      $region11: #{tpu_custom_call.1} parent=5 // pred_region
        %s136 = ssub.s32 %s18, 1
      $region12: #{tpu_custom_call.1} parent=5 // pred_fallthru
        _
      %p137 = scmp.lt.s32.totalorder %s18, 2
      // Predicated region
      $region13: #{tpu_custom_call.1} parent=5 // pred_check
        %p138 = pneg %p137
      $region14: #{tpu_custom_call.1} parent=5 // pred_check_branch
        %140 = sbr.rel (%p138) target = $region16
      $region15: #{tpu_custom_call.1} parent=5 // pred_region
        // Predicated region
        $region17: #{tpu_custom_call.1} parent=15 // pred_check
          %p141 = pneg %p38
        $region18: #{tpu_custom_call.1} parent=15 // pred_check_branch
          %143 = sbr.rel (%p141) target = $region20
        $region19: #{tpu_custom_call.1} parent=15 // pred_region
          %s144 = sand.u32 %s28, 1
          %s145 = scalar_lea.sflag [#allocation3], %s144
          %s146 = sand.u32 %s28, 1
          %s147 = smul.addr %s146, 64
          %s148 = scalar_lea.vmem [#allocation2], %s147
          %s150 = ssub.s32 1024, 1024
          %151 = vsyncadd %s145, %s150
          %s152 = smul.addr %s18, 16
          %s153 = smul.addr %s152, 64
          %s154 = scalar_lea.hbm %s0, %s153
          %s155 = sshll.u32 %s148, 4
          %s156 = int_to_ptr.vmem [resolvable:$true] %s155
          %161 = dma.hbm_to_vmem [thread:$0]  %s154, 1024, %s156, %s145, 64, 64, 4
        $region20: #{tpu_custom_call.1} parent=15 // pred_fallthru
          _
        // Predicated region
        $region21: #{tpu_custom_call.1} parent=15 // pred_check
          %p162 = pneg %p64
        $region22: #{tpu_custom_call.1} parent=15 // pred_check_branch
          %164 = sbr.rel (%p162) target = $region24
        $region23: #{tpu_custom_call.1} parent=15 // pred_region
          %s165 = sand.u32 %s18, 1
          %s166 = scalar_lea.sflag [#allocation6], %s165
          %s167 = sand.u32 %s54, 1
          %s168 = smul.addr %s167, 8
          %s169 = scalar_lea.vmem [#allocation5], %s168
          %s171 = ssub.s32 128, 128
          %172 = vsyncadd %s166, %s171
          %s173 = smul.addr %s18, 2
          %s174 = smul.addr %s173, 64
          %s175 = scalar_lea.hbm %s1, %s174
          %s176 = sshll.u32 %s169, 4
          %s177 = int_to_ptr.vmem [resolvable:$true] %s176
          %182 = dma.hbm_to_vmem [thread:$0]  %s175, 128, %s177, %s166, 64, 64, 4
        $region24: #{tpu_custom_call.1} parent=15 // pred_fallthru
          _
        // Predicated region
        $region25: #{tpu_custom_call.1} parent=15 // pred_check
          %p183 = pneg %p90
        $region26: #{tpu_custom_call.1} parent=15 // pred_check_branch
          %185 = sbr.rel (%p183) target = $region28
        $region27: #{tpu_custom_call.1} parent=15 // pred_region
          %s186 = sand.u32 %s18, 1
          %s187 = scalar_lea.sflag [#allocation6], %s186
          %s188 = sand.u32 %s80, 1
          %s189 = smul.addr %s188, 64
          %s190 = scalar_lea.vmem [#allocation7], %s189
          %s192 = ssub.s32 1024, 1024
          %193 = vsyncadd %s187, %s192
          %s194 = smul.addr %s18, 16
          %s195 = smul.addr %s194, 64
          %s196 = scalar_lea.hbm %s2, %s195
          %s197 = sshll.u32 %s190, 4
          %s198 = int_to_ptr.vmem [resolvable:$true] %s197
          %203 = dma.hbm_to_vmem [thread:$0]  %s196, 1024, %s198, %s187, 64, 64, 4
        $region28: #{tpu_custom_call.1} parent=15 // pred_fallthru
          _
      $region16: #{tpu_custom_call.1} parent=5 // pred_fallthru
        _
      %p204 = scmp.le.s32.totalorder 1, %s18
      %p205 = scmp.lt.s32.totalorder %s18, 3
      %p206 = pnand %p204, %p205
      %p207 = pneg %p206
      // Predicated region
      $region29: #{tpu_custom_call.1} parent=5 // pred_check
        _
      $region30: #{tpu_custom_call.1} parent=5 // pred_check_branch
        %209 = sbr.rel (%p206) target = $region32
      $region31: #{tpu_custom_call.1} parent=5 // pred_region
        %s210 = ssub.s32 %s18, 1
        %s211 = sand.u32 %s31, 1
        %s212 = scalar_lea.sflag [#allocation3], %s211
        %s213 = sand.u32 %s31, 1
        %s214 = smul.addr %s213, 64
        %s215 = scalar_lea.vmem [#allocation2], %s214
        // Predicated region
        $region33: #{tpu_custom_call.1} parent=31 // pred_check
          %p216 = pneg %p44
        $region34: #{tpu_custom_call.1} parent=31 // pred_check_branch
          %218 = sbr.rel (%p216) target = $region36
        $region35: #{tpu_custom_call.1} parent=31 // pred_region
          %219 = dma.done %s212, 1024
        $region36: #{tpu_custom_call.1} parent=31 // pred_fallthru
          _
        %s220 = sand.u32 %s23, 1
        %s221 = scalar_lea.sflag [#allocation6], %s220
        %s222 = sand.u32 %s57, 1
        %s223 = smul.addr %s222, 8
        %s224 = scalar_lea.vmem [#allocation5], %s223
        // Predicated region
        $region37: #{tpu_custom_call.1} parent=31 // pred_check
          %p225 = pneg %p70
        $region38: #{tpu_custom_call.1} parent=31 // pred_check_branch
          %227 = sbr.rel (%p225) target = $region40
        $region39: #{tpu_custom_call.1} parent=31 // pred_region
          %228 = dma.done %s221, 128
        $region40: #{tpu_custom_call.1} parent=31 // pred_fallthru
          _
        %s229 = sand.u32 %s23, 1
        %s230 = scalar_lea.sflag [#allocation6], %s229
        %s231 = sand.u32 %s83, 1
        %s232 = smul.addr %s231, 64
        %s233 = scalar_lea.vmem [#allocation7], %s232
        // Predicated region
        $region41: #{tpu_custom_call.1} parent=31 // pred_check
          %p234 = pneg %p96
        $region42: #{tpu_custom_call.1} parent=31 // pred_check_branch
          %236 = sbr.rel (%p234) target = $region44
        $region43: #{tpu_custom_call.1} parent=31 // pred_region
          %237 = dma.done %s230, 1024
        $region44: #{tpu_custom_call.1} parent=31 // pred_fallthru
          _
        %s238 = sand.u32 %s31, 1
        %s239 = scalar_lea.sflag [#allocation3], %s238
        %s240 = sand.u32 %s31, 1
        %s241 = smul.addr %s240, 64
        %s242 = scalar_lea.vmem [#allocation2], %s241
        %p243 = pneg %p44
        %p244 = pneg %p41
        %s245 = sand.u32 %s23, 1
        %s246 = scalar_lea.sflag [#allocation6], %s245
        %s247 = sand.u32 %s57, 1
        %s248 = smul.addr %s247, 8
        %s249 = scalar_lea.vmem [#allocation5], %s248
        %p250 = pneg %p70
        %p251 = pneg %p67
        %s252 = sand.u32 %s23, 1
        %s253 = scalar_lea.sflag [#allocation6], %s252
        %s254 = sand.u32 %s83, 1
        %s255 = smul.addr %s254, 64
        %s256 = scalar_lea.vmem [#allocation7], %s255
        %p257 = pneg %p96
        %p258 = pneg %p93
        %p259 = pneg %p122
        %p260 = pneg %p119
        %s261 = sand.u32 %s109, 1
        %s262 = scalar_lea.sflag [#allocation4], %s261
        %s263 = sand.u32 %s109, 1
        %s264 = smul.addr %s263, 8
        %s265 = scalar_lea.vmem [#allocation8], %s264
        %v267 = vld [vmem:[%s215] sm:$0xf]
        %v268 = vld [vmem:[%s215 + $0x4] sm:$0xf]
        %v269 = vld [vmem:[%s215 + $0x8] sm:$0xf]
        %v270 = vld [vmem:[%s215 + $0xc] sm:$0xf]
        %v271 = vld [vmem:[%s215 + $0x10] sm:$0xf]
        %v272 = vld [vmem:[%s215 + $0x14] sm:$0xf]
        %v273 = vld [vmem:[%s215 + $0x18] sm:$0xf]
        %v274 = vld [vmem:[%s215 + $0x1c] sm:$0xf]
        %v275 = vld [vmem:[%s215 + $0x20] sm:$0xf]
        %v276 = vld [vmem:[%s215 + $0x24] sm:$0xf]
        %v277 = vld [vmem:[%s215 + $0x28] sm:$0xf]
        %v278 = vld [vmem:[%s215 + $0x2c] sm:$0xf]
        %v279 = vld [vmem:[%s215 + $0x30] sm:$0xf]
        %v280 = vld [vmem:[%s215 + $0x34] sm:$0xf]
        %v281 = vld [vmem:[%s215 + $0x38] sm:$0xf]
        %v282 = vld [vmem:[%s215 + $0x3c] sm:$0xf]
        %v283 = vld [vmem:[%s233] sm:$0xf]
        %v284 = vld [vmem:[%s233 + $0x4] sm:$0xf]
        %v285 = vld [vmem:[%s233 + $0x8] sm:$0xf]
        %v286 = vld [vmem:[%s233 + $0xc] sm:$0xf]
        %v287 = vld [vmem:[%s233 + $0x10] sm:$0xf]
        %v288 = vld [vmem:[%s233 + $0x14] sm:$0xf]
        %v289 = vld [vmem:[%s233 + $0x18] sm:$0xf]
        %v290 = vld [vmem:[%s233 + $0x1c] sm:$0xf]
        %v291 = vld [vmem:[%s233 + $0x20] sm:$0xf]
        %v292 = vld [vmem:[%s233 + $0x24] sm:$0xf]
        %v293 = vld [vmem:[%s233 + $0x28] sm:$0xf]
        %v294 = vld [vmem:[%s233 + $0x2c] sm:$0xf]
        %v295 = vld [vmem:[%s233 + $0x30] sm:$0xf]
        %v296 = vld [vmem:[%s233 + $0x34] sm:$0xf]
        %v297 = vld [vmem:[%s233 + $0x38] sm:$0xf]
        %v298 = vld [vmem:[%s233 + $0x3c] sm:$0xf]
        %v315 = vunpack.c.l.b16 %v267
        %v316 = vunpack.c.l.b16 %v268
        %v317 = vunpack.c.l.b16 %v269
        %v318 = vunpack.c.l.b16 %v270
        %v319 = vunpack.c.l.b16 %v271
        %v320 = vunpack.c.l.b16 %v272
        %v321 = vunpack.c.l.b16 %v273
        %v322 = vunpack.c.l.b16 %v274
        %v323 = vunpack.c.l.b16 %v275
        %v324 = vunpack.c.l.b16 %v276
        %v325 = vunpack.c.l.b16 %v277
        %v326 = vunpack.c.l.b16 %v278
        %v327 = vunpack.c.l.b16 %v279
        %v328 = vunpack.c.l.b16 %v280
        %v329 = vunpack.c.l.b16 %v281
        %v330 = vunpack.c.l.b16 %v282
        %v331 = vpack.c.b16 %v316, %v315
        %v332 = vpack.c.b16 %v318, %v317
        %v333 = vpack.c.b16 %v320, %v319
        %v334 = vpack.c.b16 %v322, %v321
        %v335 = vpack.c.b16 %v324, %v323
        %v336 = vpack.c.b16 %v326, %v325
        %v337 = vpack.c.b16 %v328, %v327
        %v338 = vpack.c.b16 %v330, %v329
        %v363 = vunpack.c.l.b16 %v283
        %v364 = vunpack.c.l.b16 %v284
        %v365 = vunpack.c.l.b16 %v285
        %v366 = vunpack.c.l.b16 %v286
        %v367 = vunpack.c.l.b16 %v287
        %v368 = vunpack.c.l.b16 %v288
        %v369 = vunpack.c.l.b16 %v289
        %v370 = vunpack.c.l.b16 %v290
        %v371 = vunpack.c.l.b16 %v291
        %v372 = vunpack.c.l.b16 %v292
        %v373 = vunpack.c.l.b16 %v293
        %v374 = vunpack.c.l.b16 %v294
        %v375 = vunpack.c.l.b16 %v295
        %v376 = vunpack.c.l.b16 %v296
        %v377 = vunpack.c.l.b16 %v297
        %v378 = vunpack.c.l.b16 %v298
        %v379 = vpack.c.b16 %v364, %v363
        %v380 = vpack.c.b16 %v366, %v365
        %v381 = vpack.c.b16 %v368, %v367
        %v382 = vpack.c.b16 %v370, %v369
        %v383 = vpack.c.b16 %v372, %v371
        %v384 = vpack.c.b16 %v374, %v373
        %v385 = vpack.c.b16 %v376, %v375
        %v386 = vpack.c.b16 %v378, %v377
        %395 = vmatprep.subr.bf16.mxu0 0
        %396 = vmatpush1.bf16.msra.mxu0 %v386
        %397 = vmatprep.subr.bf16.mxu0 0
        %398 = vmatpush1.bf16.msra.mxu0 %v385
        %399 = vmatprep.subr.bf16.mxu0 0
        %400 = vmatpush1.bf16.msra.mxu0 %v384
        %401 = vmatprep.subr.bf16.mxu0 0
        %402 = vmatpush1.bf16.msra.mxu0 %v383
        %403 = vmatprep.subr.bf16.mxu0 0
        %404 = vmatpush1.bf16.msra.mxu0 %v382
        %405 = vmatprep.subr.bf16.mxu0 0
        %406 = vmatpush1.bf16.msra.mxu0 %v381
        %407 = vmatprep.subr.bf16.mxu0 0
        %408 = vmatpush1.bf16.msra.mxu0 %v380
        %409 = vmatprep.subr.bf16.mxu0 0
        %410 = vmatpush1.bf16.msra.mxu0 %v379
        %411 = vmatprep.subr.bf16.mxu0 0
        %412 = vmatpush2.bf16.msra.mxu0 0
        %413 = vmatprep.subr.bf16.mxu0 0
        %414 = vmatpush2.bf16.msra.mxu0 0
        %415 = vmatprep.subr.bf16.mxu0 0
        %416 = vmatpush2.bf16.msra.mxu0 0
        %417 = vmatprep.subr.bf16.mxu0 0
        %418 = vmatpush2.bf16.msra.mxu0 0
        %419 = vmatprep.subr.bf16.mxu0 0
        %420 = vmatpush2.bf16.msra.mxu0 0
        %421 = vmatprep.subr.bf16.mxu0 0
        %422 = vmatpush2.bf16.msra.mxu0 0
        %423 = vmatprep.subr.bf16.mxu0 0
        %424 = vmatpush2.bf16.msra.mxu0 0
        %425 = vmatprep.subr.bf16.mxu0 0
        %426 = vmatpush2.bf16.msra.mxu0 0
        %427 = vmatprep.mubr.bf16.mxu0 0
        %428 = vmatmul.mubr.bf16.gmra.mxu0 %v331
        %v429 = vpop.f32.mrf.mxu0
        %v430 = vadd.f32 0.0, %v429
        %v431 = vpop.f32.mrf.mxu0
        %v432 = vpop.f32.mrf.mxu0
        %v433 = vadd.f32 0.0, %v432
        %v434 = vpop.f32.mrf.mxu0
        %435 = vmatprep.mubr.bf16.mxu0 0
        %436 = vmatmul.mubr.bf16.gmra.mxu0 %v332
        %v437 = vpop.f32.mrf.mxu0
        %v438 = vadd.f32 0.0, %v437
        %v439 = vpop.f32.mrf.mxu0
        %v440 = vpop.f32.mrf.mxu0
        %v441 = vadd.f32 0.0, %v440
        %v442 = vpop.f32.mrf.mxu0
        %443 = vmatprep.mubr.bf16.mxu0 0
        %444 = vmatmul.mubr.bf16.gmra.mxu0 %v333
        %v445 = vpop.f32.mrf.mxu0
        %v446 = vadd.f32 0.0, %v445
        %v447 = vpop.f32.mrf.mxu0
        %v448 = vpop.f32.mrf.mxu0
        %v449 = vadd.f32 0.0, %v448
        %v450 = vpop.f32.mrf.mxu0
        %451 = vmatprep.mubr.bf16.mxu0 0
        %452 = vmatmul.mubr.bf16.gmra.mxu0 %v334
        %v453 = vpop.f32.mrf.mxu0
        %v454 = vadd.f32 0.0, %v453
        %v455 = vpop.f32.mrf.mxu0
        %v456 = vpop.f32.mrf.mxu0
        %v457 = vadd.f32 0.0, %v456
        %v458 = vpop.f32.mrf.mxu0
        %459 = vmatprep.mubr.bf16.mxu0 0
        %460 = vmatmul.mubr.bf16.gmra.mxu0 %v335
        %v461 = vpop.f32.mrf.mxu0
        %v462 = vadd.f32 0.0, %v461
        %v463 = vpop.f32.mrf.mxu0
        %v464 = vpop.f32.mrf.mxu0
        %v465 = vadd.f32 0.0, %v464
        %v466 = vpop.f32.mrf.mxu0
        %467 = vmatprep.mubr.bf16.mxu0 0
        %468 = vmatmul.mubr.bf16.gmra.mxu0 %v336
        %v469 = vpop.f32.mrf.mxu0
        %v470 = vadd.f32 0.0, %v469
        %v471 = vpop.f32.mrf.mxu0
        %v472 = vpop.f32.mrf.mxu0
        %v473 = vadd.f32 0.0, %v472
        %v474 = vpop.f32.mrf.mxu0
        %475 = vmatprep.mubr.bf16.mxu0 0
        %476 = vmatmul.mubr.bf16.gmra.mxu0 %v337
        %v477 = vpop.f32.mrf.mxu0
        %v478 = vadd.f32 0.0, %v477
        %v479 = vpop.f32.mrf.mxu0
        %v480 = vpop.f32.mrf.mxu0
        %v481 = vadd.f32 0.0, %v480
        %v482 = vpop.f32.mrf.mxu0
        %483 = vmatprep.mubr.bf16.mxu0 0
        %484 = vmatmul.mubr.bf16.gmra.mxu0 %v338
        %v485 = vpop.f32.mrf.mxu0
        %v486 = vadd.f32 0.0, %v485
        %v487 = vpop.f32.mrf.mxu0
        %v488 = vpop.f32.mrf.mxu0
        %v489 = vadd.f32 0.0, %v488
        %v490 = vpop.f32.mrf.mxu0
        %491 = vdwg.mxu0
        %v492 = vpack.c.bf16 %v433, %v430
        %v493 = vpack.c.bf16 %v441, %v438
        %v494 = vpack.c.bf16 %v449, %v446
        %v495 = vpack.c.bf16 %v457, %v454
        %v496 = vpack.c.bf16 %v465, %v462
        %v497 = vpack.c.bf16 %v473, %v470
        %v498 = vpack.c.bf16 %v481, %v478
        %v499 = vpack.c.bf16 %v489, %v486
        %v500 = vld [vmem:[%s224] sm:$0xf]
        %v501 = vld [vmem:[%s224 + $0x4] sm:$0xf]
        %v504 = vunpack.c.l.b16 %v500
        %v505 = vunpack.c.l.b16 %v501
        %v506 = vpack.c.b16 %v505, %v504
        %508 = vmatprep.subr.bf16.mxu0 0
        %509 = vmatpush1.bf16.msra.mxu0 %v499
        %510 = vmatprep.subr.bf16.mxu0 0
        %511 = vmatpush1.bf16.msra.mxu0 %v498
        %512 = vmatprep.subr.bf16.mxu0 0
        %513 = vmatpush1.bf16.msra.mxu0 %v497
        %514 = vmatprep.subr.bf16.mxu0 0
        %515 = vmatpush1.bf16.msra.mxu0 %v496
        %516 = vmatprep.subr.bf16.mxu0 0
        %517 = vmatpush1.bf16.msra.mxu0 %v495
        %518 = vmatprep.subr.bf16.mxu0 0
        %519 = vmatpush1.bf16.msra.mxu0 %v494
        %520 = vmatprep.subr.bf16.mxu0 0
        %521 = vmatpush1.bf16.msra.mxu0 %v493
        %522 = vmatprep.subr.bf16.mxu0 0
        %523 = vmatpush1.bf16.msra.mxu0 %v492
        %524 = vmatprep.subr.bf16.mxu0 0
        %525 = vmatpush2.bf16.msra.mxu0 0
        %526 = vmatprep.subr.bf16.mxu0 0
        %527 = vmatpush2.bf16.msra.mxu0 0
        %528 = vmatprep.subr.bf16.mxu0 0
        %529 = vmatpush2.bf16.msra.mxu0 0
        %530 = vmatprep.subr.bf16.mxu0 0
        %531 = vmatpush2.bf16.msra.mxu0 0
        %532 = vmatprep.subr.bf16.mxu0 0
        %533 = vmatpush2.bf16.msra.mxu0 0
        %534 = vmatprep.subr.bf16.mxu0 0
        %535 = vmatpush2.bf16.msra.mxu0 0
        %536 = vmatprep.subr.bf16.mxu0 0
        %537 = vmatpush2.bf16.msra.mxu0 0
        %538 = vmatprep.subr.bf16.mxu0 0
        %539 = vmatpush2.bf16.msra.mxu0 0
        %540 = vmatprep.mubr.bf16.mxu0 0
        %541 = vmatmul.mubr.bf16.gmra.mxu0 %v506
        %v542 = vpop.f32.mrf.mxu0
        %v543 = vadd.f32 0.0, %v542
        %v544 = vpop.f32.mrf.mxu0
        %v545 = vpop.f32.mrf.mxu0
        %v546 = vadd.f32 0.0, %v545
        %v547 = vpop.f32.mrf.mxu0
        %548 = vdwg.mxu0
        %v549 = vpack.c.bf16 %v546, %v543
        %v551 = vunpack.c.l.b16 %v549
        %v552 = vunpack.c.h.b16 %v549
        %v553 = vpack.c.b16 %v551, %v551
        %v554 = vpack.c.b16 %v552, %v552
        %557 = vst [vmem:[%s265] sm:$0xf] %v553
        %558 = vst [vmem:[%s265 + $0x4] sm:$0xf] %v554
        %s559 = sand.u32 %s109, 1
        %s560 = scalar_lea.sflag [#allocation4], %s559
        %s561 = sand.u32 %s109, 1
        %s562 = smul.addr %s561, 8
        %s563 = scalar_lea.vmem [#allocation8], %s562
        // Predicated region
        $region45: #{tpu_custom_call.1} parent=31 // pred_check
          %p564 = pneg %p119
        $region46: #{tpu_custom_call.1} parent=31 // pred_check_branch
          %566 = sbr.rel (%p564) target = $region48
        $region47: #{tpu_custom_call.1} parent=31 // pred_region
          %s568 = ssub.s32 128, 128
          %569 = vsyncadd %s560, %s568
          %s570 = smul.addr %s23, 2
          %s571 = smul.addr %s570, 64
          %s572 = scalar_lea.hbm %s3, %s571
          %s573 = sshll.u32 %s563, 4
          %s574 = int_to_ptr.vmem [resolvable:$true] %s573
          %579 = dma.vmem_to_hbm [thread:$0]  %s574, 128, %s572, %s560, 64, 64, 4
        $region48: #{tpu_custom_call.1} parent=31 // pred_fallthru
          _
      $region32: #{tpu_custom_call.1} parent=5 // pred_fallthru
        _
      %p580 = scmp.le.s32.totalorder 2, %s18
      // Predicated region
      $region49: #{tpu_custom_call.1} parent=5 // pred_check
        %p581 = pneg %p580
      $region50: #{tpu_custom_call.1} parent=5 // pred_check_branch
        %583 = sbr.rel (%p581) target = $region52
      $region51: #{tpu_custom_call.1} parent=5 // pred_region
        %s584 = ssub.s32 %s18, 2
        // Predicated region
        $region53: #{tpu_custom_call.1} parent=51 // pred_check
          %p585 = pneg %p125
        $region54: #{tpu_custom_call.1} parent=51 // pred_check_branch
          %587 = sbr.rel (%p585) target = $region56
        $region55: #{tpu_custom_call.1} parent=51 // pred_region
          %s588 = sand.u32 %s110, 1
          %s589 = scalar_lea.sflag [#allocation4], %s588
          %s590 = sand.u32 %s110, 1
          %s591 = smul.addr %s590, 8
          %s592 = scalar_lea.vmem [#allocation8], %s591
          %593 = dma.done %s589, 128
        $region56: #{tpu_custom_call.1} parent=51 // pred_fallthru
          _
      $region52: #{tpu_custom_call.1} parent=5 // pred_fallthru
        _
    $region6: #{tpu_custom_call.1} parent=1 // loop_footer
      %s22 = sadd.s32 1, %s18
    $region7: #{tpu_custom_call.1} parent=1 // loop_footer_branch
      %17 = sbr.rel target = $region3
    $region8: #{tpu_custom_call.1} parent=1 // loop_exit
      _
    %594 = vsyncpa [#allocation3], 1
    %s595 = scalar_lea.sflag [#allocation3], 1
    %596 = vsyncpa %s595, 1
    %597 = vsyncpa [#allocation6], 1
    %s598 = scalar_lea.sflag [#allocation6], 1
    %599 = vsyncpa %s598, 1
    %600 = vsyncpa [#allocation4], 1
    %s601 = scalar_lea.sflag [#allocation4], 1
    %602 = vsyncpa %s601, 1

</llo_original>
